<compile_context>
chip_gen: v7x
topology: tpu7x:2x2x1
jax: 0.10.0
libtpu: 0.0.40
codegen_flags: <defaults>
</compile_context>

<pallas_src>
import jax
import jax.numpy as jnp
from jax.experimental import pallas as pl
from jax.experimental.pallas import tpu as pltpu

LANE = 128      # TPU lane width
SUBLANE = 8     # TPU sublane width


def _round_up(n, m):
    return ((n + m - 1) // m) * m


# ---------------- fused Pallas kernel ----------------

def make_fused_tcn_kernel(block_meta, fc_b_row, out_cols, x_is_bf16):
    """One fused kernel:
         per block: y   = h_lo @ [w1 | wd]           (single MXU issue)
                    h1  = relu(y[:, :C] + b1)
                    res = y[:, C:2C] + bd   (or res = h  when no downsample)
                    h   = relu(relu(h1 @ w2 + b2) + res)
         out = h @ fc_w + fc_b
       Matmuls: bf16 inputs, f32 accumulation (MXU). Epilogue in f32 (VPU)."""

    def kernel(x_ref, bias_ref, *rest):
        o_ref = rest[-1]
        w_refs = rest[:-1]
        biases = bias_ref[...]                      # (NB_pad, MAXC) f32

        if x_is_bf16:
            h_lo = x_ref[...]                       # bf16, block 0 uses downsample
            h_f32 = None
        else:
            h_f32 = x_ref[...]                      # f32, needed for identity residual
            h_lo = h_f32.astype(jnp.bfloat16)

        wi = 0
        for meta in block_meta:
            cp = meta["cp"]
            w1d = w_refs[wi][...]                   # (Cin_pad, cp) or (Cin_pad, 2*cp)
            w2 = w_refs[wi + 1][...]                # (cp, cp)
            wi += 2

            y = jnp.dot(h_lo, w1d, preferred_element_type=jnp.float32)
            b1 = biases[meta["b1"]:meta["b1"] + 1, :cp]
            if meta["has_down"]:
                h1 = jnp.maximum(y[:, :cp] + b1, 0.0)
                res = y[:, cp:2 * cp] + biases[meta["bd"]:meta["bd"] + 1, :cp]
            else:
                h1 = jnp.maximum(y + b1, 0.0)
                res = h_f32

            h2 = jnp.maximum(
                jnp.dot(h1.astype(jnp.bfloat16), w2,
                        preferred_element_type=jnp.float32)
                + biases[meta["b2"]:meta["b2"] + 1, :cp], 0.0)

            h_f32 = jnp.maximum(h2 + res, 0.0)
            h_lo = h_f32.astype(jnp.bfloat16)

        fc_w = w_refs[wi][...]
        o_ref[...] = (jnp.dot(h_lo, fc_w, preferred_element_type=jnp.float32)
                      + biases[fc_b_row:fc_b_row + 1, :out_cols])

    return kernel


# ---------------- wrapper ----------------

def tcn_forward(x, padded):
    """x: (B, T, input_size) f32 -> (B, output_size) f32."""
    B, T, C_in = x.shape
    c_in_pad = padded["c_in_pad"]
    out_pad = padded["out_pad"]

    # kernel_size=1 => only the last timestep reaches the FC.
    last = x[:, -1, :]                                           # (B, C_in)

    # Pad rows to full sublanes and pick a row tile.
    m_pad = _round_up(B, SUBLANE)
    tile_m = min(m_pad, 256)
    m_pad = _round_up(m_pad, tile_m)
    last = jnp.pad(last, ((0, m_pad - B), (0, c_in_pad - C_in)))
    last = last.astype(jnp.bfloat16 if padded["x_is_bf16"] else jnp.float32)

    def const_spec(arr):
        # Weights/biases: full block, constant index map -> fetched once, resident.
        return pl.BlockSpec(arr.shape, lambda i: (0, 0))

    flat_inputs = [last, padded["bias_slab"]]
    in_specs = [pl.BlockSpec((tile_m, c_in_pad), lambda i: (i, 0)),
                const_spec(padded["bias_slab"])]
    for w in padded["weights"]:
        flat_inputs.append(w)
        in_specs.append(const_spec(w))

    kernel = make_fused_tcn_kernel(padded["block_meta"], padded["fc_b_row"],
                                   out_pad, padded["x_is_bf16"])

    out = pl.pallas_call(
        kernel,
        out_shape=jax.ShapeDtypeStruct((m_pad, out_pad), jnp.float32),
        grid=(m_pad // tile_m,),
        in_specs=in_specs,
        out_specs=pl.BlockSpec((tile_m, out_pad), lambda i: (i, 0)),
        compiler_params=pltpu.CompilerParams(
            dimension_semantics=("parallel",),
            vmem_limit_bytes=32 * 1024 * 1024),
    )(*flat_inputs)

    return out[:B, :padded["output_size"]]


# ---------------- deterministic parameter init (mirrors PyTorch) ----------------

def init_params(key, input_size, output_size, num_channels):
    """Shapes mirror the PyTorch module with kernel_size=1.
    Conv1d weight (out, in, 1) is stored transposed+squeezed as (in, out)."""
    params = {"blocks": [], "input_size": input_size, "output_size": output_size}
    in_c = input_size
    for out_c in num_channels:
        key, k1, k2, k3, k4, k5, k6 = jax.random.split(key, 7)
        bnd1 = 1.0 / (in_c ** 0.5)
        bnd2 = 1.0 / (out_c ** 0.5)
        blk = {
            "w1": jax.random.uniform(k1, (in_c, out_c), jnp.float32, -bnd1, bnd1),
            "b1": jax.random.uniform(k2, (out_c,), jnp.float32, -bnd1, bnd1),
            "w2": jax.random.uniform(k3, (out_c, out_c), jnp.float32, -bnd2, bnd2),
            "b2": jax.random.uniform(k4, (out_c,), jnp.float32, -bnd2, bnd2),
        }
        if in_c != out_c:  # downsample = Conv1d(in_c, out_c, 1)
            blk["wd"] = jax.random.uniform(k5, (in_c, out_c), jnp.float32, -bnd1, bnd1)
            blk["bd"] = jax.random.uniform(k6, (out_c,), jnp.float32, -bnd1, bnd1)
        params["blocks"].append(blk)
        in_c = out_c

    key, kw, kb = jax.random.split(key, 3)
    bnd = 1.0 / (in_c ** 0.5)
    params["fc_w"] = jax.random.uniform(kw, (in_c, output_size), jnp.float32, -bnd, bnd)
    params["fc_b"] = jax.random.uniform(kb, (output_size,), jnp.float32, -bnd, bnd)
    return params


def prepare_params(params):
    """Zero-pad channel dims to the 128-lane width, concat conv1+downsample
    weights along N (single MXU issue per block), pack all biases into one
    (rows, MAXC) f32 slab, cast matmul weights to bf16."""
    c_in_pad = _round_up(params["input_size"], LANE)
    out_pad = _round_up(params["output_size"], LANE)

    def pad_w(w, rows, cols):
        return jnp.pad(
            w, ((0, rows - w.shape[0]), (0, cols - w.shape[1]))).astype(jnp.bfloat16)

    # Max padded width across all bias vectors (block outputs + fc output).
    cps = [_round_up(blk["w1"].shape[1], LANE) for blk in params["blocks"]]
    maxc = max(cps + [out_pad])

    def pad_bias_row(b):
        return jnp.pad(b, (0, maxc - b.shape[0])).astype(jnp.float32)

    weights = []
    bias_rows = []
    block_meta = []

    for blk, cp in zip(params["blocks"], cps):
        in_c, out_c = blk["w1"].shape
        rp = _round_up(in_c, LANE)
        has_down = "wd" in blk

        w1p = pad_w(blk["w1"], rp, cp)
        if has_down:
            # Fused conv1 || downsample weight: one (rp, 2*cp) MXU pass.
            w1p = jnp.concatenate([w1p, pad_w(blk["wd"], rp, cp)], axis=1)
        weights.append(w1p)
        weights.append(pad_w(blk["w2"], cp, cp))

        meta = {"has_down": has_down, "cp": cp,
                "b1": len(bias_rows), "b2": len(bias_rows) + 1, "bd": None}
        bias_rows.append(pad_bias_row(blk["b1"]))
        bias_rows.append(pad_bias_row(blk["b2"]))
        if has_down:
            meta["bd"] = len(bias_rows)
            bias_rows.append(pad_bias_row(blk["bd"]))
        block_meta.append(meta)

    fc_in, out_sz = params["fc_w"].shape
    weights.append(pad_w(params["fc_w"], _round_up(fc_in, LANE), out_pad))
    fc_b_row = len(bias_rows)
    bias_rows.append(pad_bias_row(params["fc_b"]))

    slab = jnp.stack(bias_rows, axis=0)                    # (NB, maxc) f32
    nb_pad = _round_up(slab.shape[0], SUBLANE)
    slab = jnp.pad(slab, ((0, nb_pad - slab.shape[0]), (0, 0)))

    return {
        "weights": weights,
        "bias_slab": slab,
        "block_meta": block_meta,
        "fc_b_row": fc_b_row,
        "c_in_pad": c_in_pad,
        "out_pad": out_pad,
        "output_size": params["output_size"],
        # If block 0 has a downsample, its residual never needs the f32 input,
        # so ship the input as bf16 (half the input DMA bytes, no in-kernel cast).
        "x_is_bf16": block_meta[0]["has_down"],
    }


# ---------------- pure-JAX reference (same bf16/f32-acc math) ----------------

def tcn_reference(x, params):
    h = x[:, -1, :].astype(jnp.float32)
    for blk in params["blocks"]:
        h_lo = h.astype(jnp.bfloat16)
        h1 = jnp.maximum(
            jnp.dot(h_lo, blk["w1"].astype(jnp.bfloat16),
                    preferred_element_type=jnp.float32) + blk["b1"], 0.0)
        h2 = jnp.maximum(
            jnp.dot(h1.astype(jnp.bfloat16), blk["w2"].astype(jnp.bfloat16),
                    preferred_element_type=jnp.float32) + blk["b2"], 0.0)
        if "wd" in blk:
            res = jnp.dot(h_lo, blk["wd"].astype(jnp.bfloat16),
                          preferred_element_type=jnp.float32) + blk["bd"]
        else:
            res = h
        h = jnp.maximum(h2 + res, 0.0)
    return jnp.dot(h.astype(jnp.bfloat16), params["fc_w"].astype(jnp.bfloat16),
                   preferred_element_type=jnp.float32) + params["fc_b"]


if __name__ == "__main__":
    # TCN(input_size=8, output_size=4, num_channels=[32, 32], kernel_size=1, dropout=0.2)
    B, T = 2, 16
    input_size, output_size = 8, 4
    num_channels = [32, 32]

    key = jax.random.PRNGKey(0)
    key, kx, kp = jax.random.split(key, 3)
    x = jax.random.normal(kx, (B, T, input_size), jnp.float32)

    params = init_params(kp, input_size, output_size, num_channels)
    padded = prepare_params(params)

    out = jax.block_until_ready(tcn_forward(x, padded))
    ref = tcn_reference(x, params)

    assert out.shape == (B, output_size)
    assert jnp.allclose(out, ref, atol=1e-3, rtol=1e-3)
    print("KERNEL_OK")
</pallas_src>

<mosaic_0001>
module attributes {stable_mosaic.version = 11 : i64} {
  func.func @kernel(%arg0: i32, %arg1: memref<8x128xbf16, #tpu.memory_space<vmem>>, %arg2: memref<8x128xf32, #tpu.memory_space<vmem>>, %arg3: memref<128x256xbf16, #tpu.memory_space<vmem>>, %arg4: memref<128x128xbf16, #tpu.memory_space<vmem>>, %arg5: memref<128x128xbf16, #tpu.memory_space<vmem>>, %arg6: memref<128x128xbf16, #tpu.memory_space<vmem>>, %arg7: memref<128x128xbf16, #tpu.memory_space<vmem>>, %arg8: memref<8x128xf32, #tpu.memory_space<vmem>>) attributes {dimension_semantics = [#tpu.dimension_semantics<parallel>], iteration_bounds = array<i64: 1>, scalar_prefetch = 0 : i64, scratch_operands = 0 : i64, tpu.core_type = #tpu.core_type<tc>, window_params = [{transform_indices = @transform_0, window_bounds = array<i64: 8, 128>}, {pipeline_mode = #tpu.pipeline_mode<synchronous>, transform_indices = @transform_1, window_bounds = array<i64: 8, 128>}, {pipeline_mode = #tpu.pipeline_mode<synchronous>, transform_indices = @transform_2, window_bounds = array<i64: 128, 256>}, {pipeline_mode = #tpu.pipeline_mode<synchronous>, transform_indices = @transform_3, window_bounds = array<i64: 128, 128>}, {pipeline_mode = #tpu.pipeline_mode<synchronous>, transform_indices = @transform_4, window_bounds = array<i64: 128, 128>}, {pipeline_mode = #tpu.pipeline_mode<synchronous>, transform_indices = @transform_5, window_bounds = array<i64: 128, 128>}, {pipeline_mode = #tpu.pipeline_mode<synchronous>, transform_indices = @transform_6, window_bounds = array<i64: 128, 128>}, {transform_indices = @transform_7, window_bounds = array<i64: 8, 128>}]} {
    %c0 = arith.constant 0 : index
    %c0_0 = arith.constant 0 : index
    %0 = vector.load %arg2[%c0, %c0_0] : memref<8x128xf32, #tpu.memory_space<vmem>>, vector<8x128xf32>
    %c0_1 = arith.constant 0 : index
    %c0_2 = arith.constant 0 : index
    %1 = vector.load %arg1[%c0_1, %c0_2] : memref<8x128xbf16, #tpu.memory_space<vmem>>, vector<8x128xbf16>
    %c0_3 = arith.constant 0 : index
    %c0_4 = arith.constant 0 : index
    %2 = vector.load %arg3[%c0_3, %c0_4] : memref<128x256xbf16, #tpu.memory_space<vmem>>, vector<128x256xbf16>
    %c0_5 = arith.constant 0 : index
    %c0_6 = arith.constant 0 : index
    %3 = vector.load %arg4[%c0_5, %c0_6] : memref<128x128xbf16, #tpu.memory_space<vmem>>, vector<128x128xbf16>
    %cst = arith.constant dense<0.000000e+00> : vector<8x256xf32>
    %4 = tpu.matmul %1, %2, %cst {dimension_numbers = #tpu.dot_dimension_numbers<[1], [0], [0], [1], [0, 0, 1, 1], [], []>} : vector<8x128xbf16>, vector<128x256xbf16>, vector<8x256xf32> -> vector<8x256xf32>
    %5 = vector.extract_strided_slice %0 {offsets = [0, 0], sizes = [1, 128], strides = [1, 1]} : vector<8x128xf32> to vector<1x128xf32>
    %6 = vector.extract_strided_slice %4 {offsets = [0, 0], sizes = [8, 128], strides = [1, 1]} : vector<8x256xf32> to vector<8x128xf32>
    %7 = vector.broadcast %5 : vector<1x128xf32> to vector<8x128xf32>
    %8 = arith.addf %6, %7 : vector<8x128xf32>
    %cst_7 = arith.constant 0.000000e+00 : f32
    %9 = vector.broadcast %cst_7 : f32 to vector<8x128xf32>
    %10 = arith.maximumf %8, %9 : vector<8x128xf32>
    %11 = vector.extract_strided_slice %4 {offsets = [0, 128], sizes = [8, 128], strides = [1, 1]} : vector<8x256xf32> to vector<8x128xf32>
    %12 = vector.extract_strided_slice %0 {offsets = [2, 0], sizes = [1, 128], strides = [1, 1]} : vector<8x128xf32> to vector<1x128xf32>
    %13 = vector.broadcast %12 : vector<1x128xf32> to vector<8x128xf32>
    %14 = arith.addf %11, %13 : vector<8x128xf32>
    %15 = arith.truncf %10 : vector<8x128xf32> to vector<8x128xbf16>
    %cst_8 = arith.constant dense<0.000000e+00> : vector<8x128xf32>
    %16 = tpu.matmul %15, %3, %cst_8 {dimension_numbers = #tpu.dot_dimension_numbers<[1], [0], [0], [1], [0, 0, 1, 1], [], []>} : vector<8x128xbf16>, vector<128x128xbf16>, vector<8x128xf32> -> vector<8x128xf32>
    %17 = vector.extract_strided_slice %0 {offsets = [1, 0], sizes = [1, 128], strides = [1, 1]} : vector<8x128xf32> to vector<1x128xf32>
    %18 = vector.broadcast %17 : vector<1x128xf32> to vector<8x128xf32>
    %19 = arith.addf %16, %18 : vector<8x128xf32>
    %cst_9 = arith.constant 0.000000e+00 : f32
    %20 = vector.broadcast %cst_9 : f32 to vector<8x128xf32>
    %21 = arith.maximumf %19, %20 : vector<8x128xf32>
    %22 = arith.addf %21, %14 : vector<8x128xf32>
    %cst_10 = arith.constant 0.000000e+00 : f32
    %23 = vector.broadcast %cst_10 : f32 to vector<8x128xf32>
    %24 = arith.maximumf %22, %23 : vector<8x128xf32>
    %25 = arith.truncf %24 : vector<8x128xf32> to vector<8x128xbf16>
    %c0_11 = arith.constant 0 : index
    %c0_12 = arith.constant 0 : index
    %26 = vector.load %arg5[%c0_11, %c0_12] : memref<128x128xbf16, #tpu.memory_space<vmem>>, vector<128x128xbf16>
    %c0_13 = arith.constant 0 : index
    %c0_14 = arith.constant 0 : index
    %27 = vector.load %arg6[%c0_13, %c0_14] : memref<128x128xbf16, #tpu.memory_space<vmem>>, vector<128x128xbf16>
    %cst_15 = arith.constant dense<0.000000e+00> : vector<8x128xf32>
    %28 = tpu.matmul %25, %26, %cst_15 {dimension_numbers = #tpu.dot_dimension_numbers<[1], [0], [0], [1], [0, 0, 1, 1], [], []>} : vector<8x128xbf16>, vector<128x128xbf16>, vector<8x128xf32> -> vector<8x128xf32>
    %29 = vector.extract_strided_slice %0 {offsets = [3, 0], sizes = [1, 128], strides = [1, 1]} : vector<8x128xf32> to vector<1x128xf32>
    %30 = vector.broadcast %29 : vector<1x128xf32> to vector<8x128xf32>
    %31 = arith.addf %28, %30 : vector<8x128xf32>
    %cst_16 = arith.constant 0.000000e+00 : f32
    %32 = vector.broadcast %cst_16 : f32 to vector<8x128xf32>
    %33 = arith.maximumf %31, %32 : vector<8x128xf32>
    %34 = arith.truncf %33 : vector<8x128xf32> to vector<8x128xbf16>
    %cst_17 = arith.constant dense<0.000000e+00> : vector<8x128xf32>
    %35 = tpu.matmul %34, %27, %cst_17 {dimension_numbers = #tpu.dot_dimension_numbers<[1], [0], [0], [1], [0, 0, 1, 1], [], []>} : vector<8x128xbf16>, vector<128x128xbf16>, vector<8x128xf32> -> vector<8x128xf32>
    %36 = vector.extract_strided_slice %0 {offsets = [4, 0], sizes = [1, 128], strides = [1, 1]} : vector<8x128xf32> to vector<1x128xf32>
    %37 = vector.broadcast %36 : vector<1x128xf32> to vector<8x128xf32>
    %38 = arith.addf %35, %37 : vector<8x128xf32>
    %cst_18 = arith.constant 0.000000e+00 : f32
    %39 = vector.broadcast %cst_18 : f32 to vector<8x128xf32>
    %40 = arith.maximumf %38, %39 : vector<8x128xf32>
    %41 = arith.addf %40, %24 : vector<8x128xf32>
    %cst_19 = arith.constant 0.000000e+00 : f32
    %42 = vector.broadcast %cst_19 : f32 to vector<8x128xf32>
    %43 = arith.maximumf %41, %42 : vector<8x128xf32>
    %44 = arith.truncf %43 : vector<8x128xf32> to vector<8x128xbf16>
    %c0_20 = arith.constant 0 : index
    %c0_21 = arith.constant 0 : index
    %45 = vector.load %arg7[%c0_20, %c0_21] : memref<128x128xbf16, #tpu.memory_space<vmem>>, vector<128x128xbf16>
    %cst_22 = arith.constant dense<0.000000e+00> : vector<8x128xf32>
    %46 = tpu.matmul %44, %45, %cst_22 {dimension_numbers = #tpu.dot_dimension_numbers<[1], [0], [0], [1], [0, 0, 1, 1], [], []>} : vector<8x128xbf16>, vector<128x128xbf16>, vector<8x128xf32> -> vector<8x128xf32>
    %47 = vector.extract_strided_slice %0 {offsets = [5, 0], sizes = [1, 128], strides = [1, 1]} : vector<8x128xf32> to vector<1x128xf32>
    %48 = vector.broadcast %47 : vector<1x128xf32> to vector<8x128xf32>
    %49 = arith.addf %46, %48 : vector<8x128xf32>
    %c0_23 = arith.constant 0 : index
    %c0_24 = arith.constant 0 : index
    %50 = vector.load %arg8[%c0_23, %c0_24] : memref<8x128xf32, #tpu.memory_space<vmem>>, vector<8x128xf32>
    tpu.vector_store %arg8[%c0_23, %c0_24], %49 {strides = array<i32>} : memref<8x128xf32, #tpu.memory_space<vmem>>, vector<8x128xf32>,
    return
  }
  func.func @transform_0(%arg0: i32) -> (i32, i32) {
    %c0_i32 = arith.constant 0 : i32
    %c0_i32_0 = arith.constant 0 : i32
    return %arg0, %c0_i32 : i32, i32
  }
  func.func @transform_1(%arg0: i32) -> (i32, i32) {
    %c0_i32 = arith.constant 0 : i32
    %c0_i32_0 = arith.constant 0 : i32
    %c0_i32_1 = arith.constant 0 : i32
    return %c0_i32, %c0_i32_0 : i32, i32
  }
  func.func @transform_2(%arg0: i32) -> (i32, i32) {
    %c0_i32 = arith.constant 0 : i32
    %c0_i32_0 = arith.constant 0 : i32
    %c0_i32_1 = arith.constant 0 : i32
    return %c0_i32, %c0_i32_0 : i32, i32
  }
  func.func @transform_3(%arg0: i32) -> (i32, i32) {
    %c0_i32 = arith.constant 0 : i32
    %c0_i32_0 = arith.constant 0 : i32
    %c0_i32_1 = arith.constant 0 : i32
    return %c0_i32, %c0_i32_0 : i32, i32
  }
  func.func @transform_4(%arg0: i32) -> (i32, i32) {
    %c0_i32 = arith.constant 0 : i32
    %c0_i32_0 = arith.constant 0 : i32
    %c0_i32_1 = arith.constant 0 : i32
    return %c0_i32, %c0_i32_0 : i32, i32
  }
  func.func @transform_5(%arg0: i32) -> (i32, i32) {
    %c0_i32 = arith.constant 0 : i32
    %c0_i32_0 = arith.constant 0 : i32
    %c0_i32_1 = arith.constant 0 : i32
    return %c0_i32, %c0_i32_0 : i32, i32
  }
  func.func @transform_6(%arg0: i32) -> (i32, i32) {
    %c0_i32 = arith.constant 0 : i32
    %c0_i32_0 = arith.constant 0 : i32
    %c0_i32_1 = arith.constant 0 : i32
    return %c0_i32, %c0_i32_0 : i32, i32
  }
  func.func @transform_7(%arg0: i32) -> (i32, i32) {
    %c0_i32 = arith.constant 0 : i32
    %c0_i32_0 = arith.constant 0 : i32
    return %arg0, %c0_i32 : i32, i32
  }
}

</mosaic_0001>

<llo_original>
// kernel: tpu_custom_call.1
$region0: #{tpu_custom_call.1}
  #allocation0 [shape = 'u32[]', space=smem, size = 0x4, offset = 0x4, fixed_abs, tag = 'smem constant byte address 0x4 - core index']
  #allocation1 [shape = 'u32[144,128]{1,0:T(1,128)}', space=vmem, size = 0x12000, scoped, tag = 'internal scratch']
  %s0 = inlined_call_operand.hbm [shape: bf16[8,128], index: 0, kind: input, shape index: {}]
  %s1 = inlined_call_operand.hbm [shape: f32[8,128], index: 1, kind: input, shape index: {}]
  %s2 = inlined_call_operand.hbm [shape: bf16[128,256], index: 2, kind: input, shape index: {}]
  %s3 = inlined_call_operand.hbm [shape: bf16[128,128], index: 3, kind: input, shape index: {}]
  %s4 = inlined_call_operand.hbm [shape: bf16[128,128], index: 4, kind: input, shape index: {}]
  %s5 = inlined_call_operand.hbm [shape: bf16[128,128], index: 5, kind: input, shape index: {}]
  %s6 = inlined_call_operand.hbm [shape: bf16[128,128], index: 6, kind: input, shape index: {}]
  %s7 = inlined_call_operand.hbm [shape: f32[8,128], index: 7, kind: output, shape index: {}]
  %s8 = sld [smem:[#allocation0]]
  $region66: #{tpu_custom_call.1} parent=0
    _
  %s10 = ssub.s32 1, %s8
  %s11 = scalar_select 0, %s10, %s8
  $region1: #{tpu_custom_call.1} parent=0
    #allocation2 [shape = 'u8[2048]{0}', space=vmem, size = 0x800, scoped, tag = 'input window, operand 0, single buffered']
    #allocation3 [shape = 's32[1]{0}', space=sflag, size = 0x4, scoped, tag = 'scoped memory for tpu_custom_call.1']
    #allocation4 [shape = 's32[1]{0}', space=sflag, size = 0x4, scoped, tag = 'scoped memory for tpu_custom_call.1']
    #allocation5 [shape = 'u8[4096]{0}', space=vmem, size = 0x1000, scoped, tag = 'input window, operand 1, single buffered']
    #allocation6 [shape = 's32[1]{0}', space=sflag, size = 0x4, scoped, tag = 'scoped memory for tpu_custom_call.1']
    #allocation7 [shape = 'u8[65536]{0}', space=vmem, size = 0x10000, scoped, tag = 'input window, operand 2, single buffered']
    #allocation8 [shape = 'u8[32768]{0}', space=vmem, size = 0x8000, scoped, tag = 'input window, operand 3, single buffered']
    #allocation9 [shape = 's32[1]{0}', space=sflag, size = 0x4, scoped, tag = 'scoped memory for tpu_custom_call.1']
    #allocation10 [shape = 'u8[32768]{0}', space=vmem, size = 0x8000, scoped, tag = 'input window, operand 4, single buffered']
    #allocation11 [shape = 'u8[32768]{0}', space=vmem, size = 0x8000, scoped, tag = 'input window, operand 5, single buffered']
    #allocation12 [shape = 's32[1]{0}', space=sflag, size = 0x4, scoped, tag = 'scoped memory for tpu_custom_call.1']
    #allocation13 [shape = 'u8[32768]{0}', space=vmem, size = 0x8000, scoped, tag = 'input window, operand 6, single buffered']
    #allocation14 [shape = 'u8[4096]{0}', space=vmem, size = 0x1000, scoped, tag = 'output window, operand 0, single buffered']
    %12 = vsyncpa [#allocation3], 0
    %13 = vsyncpa [#allocation6], 0
    %14 = vsyncpa [#allocation9], 0
    %15 = vsyncpa [#allocation12], 0
    %16 = vsyncpa [#allocation4], 0
    // Predicated region
    $region2: #{tpu_custom_call.1} parent=1 // pred_check
      _
    $region3: #{tpu_custom_call.1} parent=1 // pred_check_branch
      %18 = sbr.rel (0) target = $region5
    $region4: #{tpu_custom_call.1} parent=1 // pred_region
      %s20 = ssub.s32 64, 64
      %21 = vsyncadd [#allocation3], %s20
      %s23 = sshll.u32 [#allocation2], 4
      %s24 = int_to_ptr.vmem [resolvable:$true] %s23
      %26 = dma.hbm_to_vmem [thread:$0]  %s0, 64, %s24, [#allocation3]
    $region5: #{tpu_custom_call.1} parent=1 // pred_fallthru
      _
    // Predicated region
    $region6: #{tpu_custom_call.1} parent=1 // pred_check
      _
    $region7: #{tpu_custom_call.1} parent=1 // pred_check_branch
      %28 = sbr.rel (0) target = $region9
    $region8: #{tpu_custom_call.1} parent=1 // pred_region
      %s30 = ssub.s32 128, 128
      %31 = vsyncadd [#allocation6], %s30
      %s33 = sshll.u32 [#allocation5], 4
      %s34 = int_to_ptr.vmem [resolvable:$true] %s33
      %36 = dma.hbm_to_vmem [thread:$0]  %s1, 128, %s34, [#allocation6]
    $region9: #{tpu_custom_call.1} parent=1 // pred_fallthru
      _
    // Predicated region
    $region10: #{tpu_custom_call.1} parent=1 // pred_check
      _
    $region11: #{tpu_custom_call.1} parent=1 // pred_check_branch
      %38 = sbr.rel (0) target = $region13
    $region12: #{tpu_custom_call.1} parent=1 // pred_region
      %s40 = ssub.s32 2048, 2048
      %41 = vsyncadd [#allocation6], %s40
      %s42 = sshll.u32 [#allocation7], 4
      %s43 = int_to_ptr.vmem [resolvable:$true] %s42
      %48 = dma.hbm_to_vmem [thread:$0]  %s2, 2048, %s43, [#allocation6], 128, 128, 8
    $region13: #{tpu_custom_call.1} parent=1 // pred_fallthru
      _
    // Predicated region
    $region14: #{tpu_custom_call.1} parent=1 // pred_check
      _
    $region15: #{tpu_custom_call.1} parent=1 // pred_check_branch
      %50 = sbr.rel (0) target = $region17
    $region16: #{tpu_custom_call.1} parent=1 // pred_region
      %s52 = ssub.s32 1024, 1024
      %53 = vsyncadd [#allocation9], %s52
      %s54 = sshll.u32 [#allocation8], 4
      %s55 = int_to_ptr.vmem [resolvable:$true] %s54
      %60 = dma.hbm_to_vmem [thread:$0]  %s3, 1024, %s55, [#allocation9], 64, 64, 4
    $region17: #{tpu_custom_call.1} parent=1 // pred_fallthru
      _
    // Predicated region
    $region18: #{tpu_custom_call.1} parent=1 // pred_check
      _
    $region19: #{tpu_custom_call.1} parent=1 // pred_check_branch
      %62 = sbr.rel (0) target = $region21
    $region20: #{tpu_custom_call.1} parent=1 // pred_region
      %s64 = ssub.s32 1024, 1024
      %65 = vsyncadd [#allocation9], %s64
      %s66 = sshll.u32 [#allocation10], 4
      %s67 = int_to_ptr.vmem [resolvable:$true] %s66
      %72 = dma.hbm_to_vmem [thread:$0]  %s4, 1024, %s67, [#allocation9], 64, 64, 4
    $region21: #{tpu_custom_call.1} parent=1 // pred_fallthru
      _
    // Predicated region
    $region22: #{tpu_custom_call.1} parent=1 // pred_check
      _
    $region23: #{tpu_custom_call.1} parent=1 // pred_check_branch
      %74 = sbr.rel (0) target = $region25
    $region24: #{tpu_custom_call.1} parent=1 // pred_region
      %s76 = ssub.s32 1024, 1024
      %77 = vsyncadd [#allocation12], %s76
      %s78 = sshll.u32 [#allocation11], 4
      %s79 = int_to_ptr.vmem [resolvable:$true] %s78
      %84 = dma.hbm_to_vmem [thread:$0]  %s5, 1024, %s79, [#allocation12], 64, 64, 4
    $region25: #{tpu_custom_call.1} parent=1 // pred_fallthru
      _
    // Predicated region
    $region26: #{tpu_custom_call.1} parent=1 // pred_check
      _
    $region27: #{tpu_custom_call.1} parent=1 // pred_check_branch
      %86 = sbr.rel (0) target = $region29
    $region28: #{tpu_custom_call.1} parent=1 // pred_region
      %s88 = ssub.s32 1024, 1024
      %89 = vsyncadd [#allocation12], %s88
      %s90 = sshll.u32 [#allocation13], 4
      %s91 = int_to_ptr.vmem [resolvable:$true] %s90
      %96 = dma.hbm_to_vmem [thread:$0]  %s6, 1024, %s91, [#allocation12], 64, 64, 4
    $region29: #{tpu_custom_call.1} parent=1 // pred_fallthru
      _
    // Predicated region
    $region30: #{tpu_custom_call.1} parent=1 // pred_check
      _
    $region31: #{tpu_custom_call.1} parent=1 // pred_check_branch
      %98 = sbr.rel (0) target = $region33
    $region32: #{tpu_custom_call.1} parent=1 // pred_region
      %99 = dma.done [#allocation3], 64
    $region33: #{tpu_custom_call.1} parent=1 // pred_fallthru
      _
    // Predicated region
    $region34: #{tpu_custom_call.1} parent=1 // pred_check
      _
    $region35: #{tpu_custom_call.1} parent=1 // pred_check_branch
      %101 = sbr.rel (0) target = $region37
    $region36: #{tpu_custom_call.1} parent=1 // pred_region
      %102 = dma.done [#allocation6], 128
    $region37: #{tpu_custom_call.1} parent=1 // pred_fallthru
      _
    // Predicated region
    $region38: #{tpu_custom_call.1} parent=1 // pred_check
      _
    $region39: #{tpu_custom_call.1} parent=1 // pred_check_branch
      %104 = sbr.rel (0) target = $region41
    $region40: #{tpu_custom_call.1} parent=1 // pred_region
      %105 = dma.done [#allocation6], 2048
    $region41: #{tpu_custom_call.1} parent=1 // pred_fallthru
      _
    // Predicated region
    $region42: #{tpu_custom_call.1} parent=1 // pred_check
      _
    $region43: #{tpu_custom_call.1} parent=1 // pred_check_branch
      %107 = sbr.rel (0) target = $region45
    $region44: #{tpu_custom_call.1} parent=1 // pred_region
      %108 = dma.done [#allocation9], 1024
    $region45: #{tpu_custom_call.1} parent=1 // pred_fallthru
      _
    // Predicated region
    $region46: #{tpu_custom_call.1} parent=1 // pred_check
      _
    $region47: #{tpu_custom_call.1} parent=1 // pred_check_branch
      %110 = sbr.rel (0) target = $region49
    $region48: #{tpu_custom_call.1} parent=1 // pred_region
      %111 = dma.done [#allocation9], 1024
    $region49: #{tpu_custom_call.1} parent=1 // pred_fallthru
      _
    // Predicated region
    $region50: #{tpu_custom_call.1} parent=1 // pred_check
      _
    $region51: #{tpu_custom_call.1} parent=1 // pred_check_branch
      %113 = sbr.rel (0) target = $region53
    $region52: #{tpu_custom_call.1} parent=1 // pred_region
      %114 = dma.done [#allocation12], 1024
    $region53: #{tpu_custom_call.1} parent=1 // pred_fallthru
      _
    // Predicated region
    $region54: #{tpu_custom_call.1} parent=1 // pred_check
      _
    $region55: #{tpu_custom_call.1} parent=1 // pred_check_branch
      %116 = sbr.rel (0) target = $region57
    $region56: #{tpu_custom_call.1} parent=1 // pred_region
      %117 = dma.done [#allocation12], 1024
    $region57: #{tpu_custom_call.1} parent=1 // pred_fallthru
      _
    %v119 = vld [vmem:[#allocation5] sm:$0xff]
    %v120 = vld [vmem:[#allocation2] sm:$0xf]
    %v121 = vld [vmem:[#allocation7] sm:$0xff]
    %v122 = vld [vmem:[#allocation7 + $0x8] sm:$0xff]
    %v123 = vld [vmem:[#allocation7 + $0x10] sm:$0xff]
    %v124 = vld [vmem:[#allocation7 + $0x18] sm:$0xff]
    %v125 = vld [vmem:[#allocation7 + $0x20] sm:$0xff]
    %v126 = vld [vmem:[#allocation7 + $0x28] sm:$0xff]
    %v127 = vld [vmem:[#allocation7 + $0x30] sm:$0xff]
    %v128 = vld [vmem:[#allocation7 + $0x38] sm:$0xff]
    %v129 = vld [vmem:[#allocation7 + $0x40] sm:$0xff]
    %v130 = vld [vmem:[#allocation7 + $0x48] sm:$0xff]
    %v131 = vld [vmem:[#allocation7 + $0x50] sm:$0xff]
    %v132 = vld [vmem:[#allocation7 + $0x58] sm:$0xff]
    %v133 = vld [vmem:[#allocation7 + $0x60] sm:$0xff]
    %v134 = vld [vmem:[#allocation7 + $0x68] sm:$0xff]
    %v135 = vld [vmem:[#allocation7 + $0x70] sm:$0xff]
    %v136 = vld [vmem:[#allocation7 + $0x78] sm:$0xff]
    %v137 = vld [vmem:[#allocation8] sm:$0xf]
    %v138 = vld [vmem:[#allocation8 + $0x4] sm:$0xf]
    %v139 = vld [vmem:[#allocation8 + $0x8] sm:$0xf]
    %v140 = vld [vmem:[#allocation8 + $0xc] sm:$0xf]
    %v141 = vld [vmem:[#allocation8 + $0x10] sm:$0xf]
    %v142 = vld [vmem:[#allocation8 + $0x14] sm:$0xf]
    %v143 = vld [vmem:[#allocation8 + $0x18] sm:$0xf]
    %v144 = vld [vmem:[#allocation8 + $0x1c] sm:$0xf]
    %v145 = vld [vmem:[#allocation8 + $0x20] sm:$0xf]
    %v146 = vld [vmem:[#allocation8 + $0x24] sm:$0xf]
    %v147 = vld [vmem:[#allocation8 + $0x28] sm:$0xf]
    %v148 = vld [vmem:[#allocation8 + $0x2c] sm:$0xf]
    %v149 = vld [vmem:[#allocation8 + $0x30] sm:$0xf]
    %v150 = vld [vmem:[#allocation8 + $0x34] sm:$0xf]
    %v151 = vld [vmem:[#allocation8 + $0x38] sm:$0xf]
    %v152 = vld [vmem:[#allocation8 + $0x3c] sm:$0xf]
    %v169 = vunpack.c.l.b16 %v121
    %v170 = vunpack.c.h.b16 %v121
    %v171 = vunpack.c.l.b16 %v122
    %v172 = vunpack.c.h.b16 %v122
    %v173 = vunpack.c.l.b16 %v123
    %v174 = vunpack.c.h.b16 %v123
    %v175 = vunpack.c.l.b16 %v124
    %v176 = vunpack.c.h.b16 %v124
    %v177 = vunpack.c.l.b16 %v125
    %v178 = vunpack.c.h.b16 %v125
    %v179 = vunpack.c.l.b16 %v126
    %v180 = vunpack.c.h.b16 %v126
    %v181 = vunpack.c.l.b16 %v127
    %v182 = vunpack.c.h.b16 %v127
    %v183 = vunpack.c.l.b16 %v128
    %v184 = vunpack.c.h.b16 %v128
    %v185 = vunpack.c.l.b16 %v129
    %v186 = vunpack.c.h.b16 %v129
    %v187 = vunpack.c.l.b16 %v130
    %v188 = vunpack.c.h.b16 %v130
    %v189 = vunpack.c.l.b16 %v131
    %v190 = vunpack.c.h.b16 %v131
    %v191 = vunpack.c.l.b16 %v132
    %v192 = vunpack.c.h.b16 %v132
    %v193 = vunpack.c.l.b16 %v133
    %v194 = vunpack.c.h.b16 %v133
    %v195 = vunpack.c.l.b16 %v134
    %v196 = vunpack.c.h.b16 %v134
    %v197 = vunpack.c.l.b16 %v135
    %v198 = vunpack.c.h.b16 %v135
    %v199 = vunpack.c.l.b16 %v136
    %v200 = vunpack.c.h.b16 %v136
    %v201 = vpack.c.b16 %v171, %v169
    %v202 = vpack.c.b16 %v172, %v170
    %v203 = vpack.c.b16 %v175, %v173
    %v204 = vpack.c.b16 %v176, %v174
    %v205 = vpack.c.b16 %v179, %v177
    %v206 = vpack.c.b16 %v180, %v178
    %v207 = vpack.c.b16 %v183, %v181
    %v208 = vpack.c.b16 %v184, %v182
    %v209 = vpack.c.b16 %v187, %v185
    %v210 = vpack.c.b16 %v188, %v186
    %v211 = vpack.c.b16 %v191, %v189
    %v212 = vpack.c.b16 %v192, %v190
    %v213 = vpack.c.b16 %v195, %v193
    %v214 = vpack.c.b16 %v196, %v194
    %v215 = vpack.c.b16 %v199, %v197
    %v216 = vpack.c.b16 %v200, %v198
    %233 = vmatprep.subr.bf16.mxu0 %v202
    %234 = vmatpush1.bf16.msra.mxu0 %v201
    %235 = vmatprep.subr.bf16.mxu0 %v204
    %236 = vmatpush1.bf16.msra.mxu0 %v203
    %237 = vmatprep.subr.bf16.mxu0 %v206
    %238 = vmatpush1.bf16.msra.mxu0 %v205
    %239 = vmatprep.subr.bf16.mxu0 %v208
    %240 = vmatpush1.bf16.msra.mxu0 %v207
    %241 = vmatprep.subr.bf16.mxu0 %v210
    %242 = vmatpush1.bf16.msra.mxu0 %v209
    %243 = vmatprep.subr.bf16.mxu0 %v212
    %244 = vmatpush1.bf16.msra.mxu0 %v211
    %245 = vmatprep.subr.bf16.mxu0 %v214
    %246 = vmatpush1.bf16.msra.mxu0 %v213
    %247 = vmatprep.subr.bf16.mxu0 %v216
    %248 = vmatpush1.bf16.msra.mxu0 %v215
    %249 = vmatprep.subr.bf16.mxu0 0
    %250 = vmatpush1.bf16.msra.mxu0 0
    %251 = vmatprep.subr.bf16.mxu0 0
    %252 = vmatpush1.bf16.msra.mxu0 0
    %253 = vmatprep.subr.bf16.mxu0 0
    %254 = vmatpush1.bf16.msra.mxu0 0
    %255 = vmatprep.subr.bf16.mxu0 0
    %256 = vmatpush1.bf16.msra.mxu0 0
    %257 = vmatprep.subr.bf16.mxu0 0
    %258 = vmatpush1.bf16.msra.mxu0 0
    %259 = vmatprep.subr.bf16.mxu0 0
    %260 = vmatpush1.bf16.msra.mxu0 0
    %261 = vmatprep.subr.bf16.mxu0 0
    %262 = vmatpush1.bf16.msra.mxu0 0
    %263 = vmatprep.subr.bf16.mxu0 0
    %264 = vmatpush1.bf16.msra.mxu0 0
    %265 = vmatprep.mubr.bf16.mxu0 0
    %266 = vmatmul.mubr.bf16.gmra.mrb[0].mxu0 %v120
    %v267 = vpop.f32.mrb[0].mxu0
    %v268 = vadd.f32 0.0, %v267
    %v269 = vpop.f32.mrb[0].mxu0
    %v270 = vadd.f32 0.0, %v269
    %v271 = vpop.f32.mrb[0].mxu0
    %v272 = vpop.f32.mrb[0].mxu0
    %273 = vdwg.mxu0
    %v274 = vlaneseq
    %v275 = vshrl.u32 %v274, 7
    %v276 = vsub.s32 0, %v275
    %v277 = vrot.slane %v119, %v276
    %v278 = vadd.f32 %v268, %v277
    %v279 = vmax.f32 %v278, 0.0
    %v280 = vlaneseq
    %v281 = vshrl.u32 %v280, 7
    %v282 = vsub.s32 2, %v281
    %v283 = vrot.slane %v119, %v282
    %v284 = vadd.f32 %v270, %v283
    %v285 = vpack.c.bf16 %v279, %v279
    %v286 = vlaneseq
    %v287 = vshrl.u32 %v286, 7
    %v288 = vsub.s32 1, %v287
    %v289 = vrot.slane %v119, %v288
    %v306 = vunpack.c.l.b16 %v137
    %v307 = vunpack.c.l.b16 %v138
    %v308 = vunpack.c.l.b16 %v139
    %v309 = vunpack.c.l.b16 %v140
    %v310 = vunpack.c.l.b16 %v141
    %v311 = vunpack.c.l.b16 %v142
    %v312 = vunpack.c.l.b16 %v143
    %v313 = vunpack.c.l.b16 %v144
    %v314 = vunpack.c.l.b16 %v145
    %v315 = vunpack.c.l.b16 %v146
    %v316 = vunpack.c.l.b16 %v147
    %v317 = vunpack.c.l.b16 %v148
    %v318 = vunpack.c.l.b16 %v149
    %v319 = vunpack.c.l.b16 %v150
    %v320 = vunpack.c.l.b16 %v151
    %v321 = vunpack.c.l.b16 %v152
    %v322 = vpack.c.b16 %v307, %v306
    %v323 = vpack.c.b16 %v309, %v308
    %v324 = vpack.c.b16 %v311, %v310
    %v325 = vpack.c.b16 %v313, %v312
    %v326 = vpack.c.b16 %v315, %v314
    %v327 = vpack.c.b16 %v317, %v316
    %v328 = vpack.c.b16 %v319, %v318
    %v329 = vpack.c.b16 %v321, %v320
    %338 = vmatprep.subr.bf16.mxu0 0
    %339 = vmatpush1.bf16.msra.mxu0 %v322
    %340 = vmatprep.subr.bf16.mxu0 0
    %341 = vmatpush1.bf16.msra.mxu0 %v323
    %342 = vmatprep.subr.bf16.mxu0 0
    %343 = vmatpush1.bf16.msra.mxu0 %v324
    %344 = vmatprep.subr.bf16.mxu0 0
    %345 = vmatpush1.bf16.msra.mxu0 %v325
    %346 = vmatprep.subr.bf16.mxu0 0
    %347 = vmatpush1.bf16.msra.mxu0 %v326
    %348 = vmatprep.subr.bf16.mxu0 0
    %349 = vmatpush1.bf16.msra.mxu0 %v327
    %350 = vmatprep.subr.bf16.mxu0 0
    %351 = vmatpush1.bf16.msra.mxu0 %v328
    %352 = vmatprep.subr.bf16.mxu0 0
    %353 = vmatpush1.bf16.msra.mxu0 %v329
    %354 = vmatprep.subr.bf16.mxu0 0
    %355 = vmatpush1.bf16.msra.mxu0 0
    %356 = vmatprep.subr.bf16.mxu0 0
    %357 = vmatpush1.bf16.msra.mxu0 0
    %358 = vmatprep.subr.bf16.mxu0 0
    %359 = vmatpush1.bf16.msra.mxu0 0
    %360 = vmatprep.subr.bf16.mxu0 0
    %361 = vmatpush1.bf16.msra.mxu0 0
    %362 = vmatprep.subr.bf16.mxu0 0
    %363 = vmatpush1.bf16.msra.mxu0 0
    %364 = vmatprep.subr.bf16.mxu0 0
    %365 = vmatpush1.bf16.msra.mxu0 0
    %366 = vmatprep.subr.bf16.mxu0 0
    %367 = vmatpush1.bf16.msra.mxu0 0
    %368 = vmatprep.subr.bf16.mxu0 0
    %369 = vmatpush1.bf16.msra.mxu0 0
    %370 = vmatprep.mubr.bf16.mxu0 0
    %371 = vmatmul.mubr.bf16.gmra.mrb[0].mxu0 %v285
    %v372 = vpop.f32.mrb[0].mxu0
    %v373 = vadd.f32 %v289, %v372
    %v374 = vpop.f32.mrb[0].mxu0
    %v375 = vpop.f32.mrb[0].mxu0
    %v376 = vpop.f32.mrb[0].mxu0
    %377 = vdwg.mxu0
    %v378 = vmax.f32 %v373, 0.0
    %v379 = vadd.f32 %v378, %v284
    %v380 = vmax.f32 %v379, 0.0
    %v381 = vpack.c.bf16 %v380, %v380
    %v382 = vld [vmem:[#allocation10] sm:$0xf]
    %v383 = vld [vmem:[#allocation10 + $0x4] sm:$0xf]
    %v384 = vld [vmem:[#allocation10 + $0x8] sm:$0xf]
    %v385 = vld [vmem:[#allocation10 + $0xc] sm:$0xf]
    %v386 = vld [vmem:[#allocation10 + $0x10] sm:$0xf]
    %v387 = vld [vmem:[#allocation10 + $0x14] sm:$0xf]
    %v388 = vld [vmem:[#allocation10 + $0x18] sm:$0xf]
    %v389 = vld [vmem:[#allocation10 + $0x1c] sm:$0xf]
    %v390 = vld [vmem:[#allocation10 + $0x20] sm:$0xf]
    %v391 = vld [vmem:[#allocation10 + $0x24] sm:$0xf]
    %v392 = vld [vmem:[#allocation10 + $0x28] sm:$0xf]
    %v393 = vld [vmem:[#allocation10 + $0x2c] sm:$0xf]
    %v394 = vld [vmem:[#allocation10 + $0x30] sm:$0xf]
    %v395 = vld [vmem:[#allocation10 + $0x34] sm:$0xf]
    %v396 = vld [vmem:[#allocation10 + $0x38] sm:$0xf]
    %v397 = vld [vmem:[#allocation10 + $0x3c] sm:$0xf]
    %v398 = vld [vmem:[#allocation11] sm:$0xf]
    %v399 = vld [vmem:[#allocation11 + $0x4] sm:$0xf]
    %v400 = vld [vmem:[#allocation11 + $0x8] sm:$0xf]
    %v401 = vld [vmem:[#allocation11 + $0xc] sm:$0xf]
    %v402 = vld [vmem:[#allocation11 + $0x10] sm:$0xf]
    %v403 = vld [vmem:[#allocation11 + $0x14] sm:$0xf]
    %v404 = vld [vmem:[#allocation11 + $0x18] sm:$0xf]
    %v405 = vld [vmem:[#allocation11 + $0x1c] sm:$0xf]
    %v406 = vld [vmem:[#allocation11 + $0x20] sm:$0xf]
    %v407 = vld [vmem:[#allocation11 + $0x24] sm:$0xf]
    %v408 = vld [vmem:[#allocation11 + $0x28] sm:$0xf]
    %v409 = vld [vmem:[#allocation11 + $0x2c] sm:$0xf]
    %v410 = vld [vmem:[#allocation11 + $0x30] sm:$0xf]
    %v411 = vld [vmem:[#allocation11 + $0x34] sm:$0xf]
    %v412 = vld [vmem:[#allocation11 + $0x38] sm:$0xf]
    %v413 = vld [vmem:[#allocation11 + $0x3c] sm:$0xf]
    %v414 = vlaneseq
    %v415 = vshrl.u32 %v414, 7
    %v416 = vsub.s32 3, %v415
    %v417 = vrot.slane %v119, %v416
    %v434 = vunpack.c.l.b16 %v382
    %v435 = vunpack.c.l.b16 %v383
    %v436 = vunpack.c.l.b16 %v384
    %v437 = vunpack.c.l.b16 %v385
    %v438 = vunpack.c.l.b16 %v386
    %v439 = vunpack.c.l.b16 %v387
    %v440 = vunpack.c.l.b16 %v388
    %v441 = vunpack.c.l.b16 %v389
    %v442 = vunpack.c.l.b16 %v390
    %v443 = vunpack.c.l.b16 %v391
    %v444 = vunpack.c.l.b16 %v392
    %v445 = vunpack.c.l.b16 %v393
    %v446 = vunpack.c.l.b16 %v394
    %v447 = vunpack.c.l.b16 %v395
    %v448 = vunpack.c.l.b16 %v396
    %v449 = vunpack.c.l.b16 %v397
    %v450 = vpack.c.b16 %v435, %v434
    %v451 = vpack.c.b16 %v437, %v436
    %v452 = vpack.c.b16 %v439, %v438
    %v453 = vpack.c.b16 %v441, %v440
    %v454 = vpack.c.b16 %v443, %v442
    %v455 = vpack.c.b16 %v445, %v444
    %v456 = vpack.c.b16 %v447, %v446
    %v457 = vpack.c.b16 %v449, %v448
    %466 = vmatprep.subr.bf16.mxu0 0
    %467 = vmatpush1.bf16.msra.mxu0 %v450
    %468 = vmatprep.subr.bf16.mxu0 0
    %469 = vmatpush1.bf16.msra.mxu0 %v451
    %470 = vmatprep.subr.bf16.mxu0 0
    %471 = vmatpush1.bf16.msra.mxu0 %v452
    %472 = vmatprep.subr.bf16.mxu0 0
    %473 = vmatpush1.bf16.msra.mxu0 %v453
    %474 = vmatprep.subr.bf16.mxu0 0
    %475 = vmatpush1.bf16.msra.mxu0 %v454
    %476 = vmatprep.subr.bf16.mxu0 0
    %477 = vmatpush1.bf16.msra.mxu0 %v455
    %478 = vmatprep.subr.bf16.mxu0 0
    %479 = vmatpush1.bf16.msra.mxu0 %v456
    %480 = vmatprep.subr.bf16.mxu0 0
    %481 = vmatpush1.bf16.msra.mxu0 %v457
    %482 = vmatprep.subr.bf16.mxu0 0
    %483 = vmatpush1.bf16.msra.mxu0 0
    %484 = vmatprep.subr.bf16.mxu0 0
    %485 = vmatpush1.bf16.msra.mxu0 0
    %486 = vmatprep.subr.bf16.mxu0 0
    %487 = vmatpush1.bf16.msra.mxu0 0
    %488 = vmatprep.subr.bf16.mxu0 0
    %489 = vmatpush1.bf16.msra.mxu0 0
    %490 = vmatprep.subr.bf16.mxu0 0
    %491 = vmatpush1.bf16.msra.mxu0 0
    %492 = vmatprep.subr.bf16.mxu0 0
    %493 = vmatpush1.bf16.msra.mxu0 0
    %494 = vmatprep.subr.bf16.mxu0 0
    %495 = vmatpush1.bf16.msra.mxu0 0
    %496 = vmatprep.subr.bf16.mxu0 0
    %497 = vmatpush1.bf16.msra.mxu0 0
    %498 = vmatprep.mubr.bf16.mxu0 0
    %499 = vmatmul.mubr.bf16.gmra.mrb[0].mxu0 %v381
    %v500 = vpop.f32.mrb[0].mxu0
    %v501 = vadd.f32 %v417, %v500
    %v502 = vpop.f32.mrb[0].mxu0
    %v503 = vpop.f32.mrb[0].mxu0
    %v504 = vpop.f32.mrb[0].mxu0
    %505 = vdwg.mxu0
    %v506 = vmax.f32 %v501, 0.0
    %v507 = vpack.c.bf16 %v506, %v506
    %v508 = vlaneseq
    %v509 = vshrl.u32 %v508, 7
    %v510 = vsub.s32 4, %v509
    %v511 = vrot.slane %v119, %v510
    %v528 = vunpack.c.l.b16 %v398
    %v529 = vunpack.c.l.b16 %v399
    %v530 = vunpack.c.l.b16 %v400
    %v531 = vunpack.c.l.b16 %v401
    %v532 = vunpack.c.l.b16 %v402
    %v533 = vunpack.c.l.b16 %v403
    %v534 = vunpack.c.l.b16 %v404
    %v535 = vunpack.c.l.b16 %v405
    %v536 = vunpack.c.l.b16 %v406
    %v537 = vunpack.c.l.b16 %v407
    %v538 = vunpack.c.l.b16 %v408
    %v539 = vunpack.c.l.b16 %v409
    %v540 = vunpack.c.l.b16 %v410
    %v541 = vunpack.c.l.b16 %v411
    %v542 = vunpack.c.l.b16 %v412
    %v543 = vunpack.c.l.b16 %v413
    %v544 = vpack.c.b16 %v529, %v528
    %v545 = vpack.c.b16 %v531, %v530
    %v546 = vpack.c.b16 %v533, %v532
    %v547 = vpack.c.b16 %v535, %v534
    %v548 = vpack.c.b16 %v537, %v536
    %v549 = vpack.c.b16 %v539, %v538
    %v550 = vpack.c.b16 %v541, %v540
    %v551 = vpack.c.b16 %v543, %v542
    %560 = vmatprep.subr.bf16.mxu0 0
    %561 = vmatpush1.bf16.msra.mxu0 %v544
    %562 = vmatprep.subr.bf16.mxu0 0
    %563 = vmatpush1.bf16.msra.mxu0 %v545
    %564 = vmatprep.subr.bf16.mxu0 0
    %565 = vmatpush1.bf16.msra.mxu0 %v546
    %566 = vmatprep.subr.bf16.mxu0 0
    %567 = vmatpush1.bf16.msra.mxu0 %v547
    %568 = vmatprep.subr.bf16.mxu0 0
    %569 = vmatpush1.bf16.msra.mxu0 %v548
    %570 = vmatprep.subr.bf16.mxu0 0
    %571 = vmatpush1.bf16.msra.mxu0 %v549
    %572 = vmatprep.subr.bf16.mxu0 0
    %573 = vmatpush1.bf16.msra.mxu0 %v550
    %574 = vmatprep.subr.bf16.mxu0 0
    %575 = vmatpush1.bf16.msra.mxu0 %v551
    %576 = vmatprep.subr.bf16.mxu0 0
    %577 = vmatpush1.bf16.msra.mxu0 0
    %578 = vmatprep.subr.bf16.mxu0 0
    %579 = vmatpush1.bf16.msra.mxu0 0
    %580 = vmatprep.subr.bf16.mxu0 0
    %581 = vmatpush1.bf16.msra.mxu0 0
    %582 = vmatprep.subr.bf16.mxu0 0
    %583 = vmatpush1.bf16.msra.mxu0 0
    %584 = vmatprep.subr.bf16.mxu0 0
    %585 = vmatpush1.bf16.msra.mxu0 0
    %586 = vmatprep.subr.bf16.mxu0 0
    %587 = vmatpush1.bf16.msra.mxu0 0
    %588 = vmatprep.subr.bf16.mxu0 0
    %589 = vmatpush1.bf16.msra.mxu0 0
    %590 = vmatprep.subr.bf16.mxu0 0
    %591 = vmatpush1.bf16.msra.mxu0 0
    %592 = vmatprep.mubr.bf16.mxu0 0
    %593 = vmatmul.mubr.bf16.gmra.mrb[0].mxu0 %v507
    %v594 = vpop.f32.mrb[0].mxu0
    %v595 = vadd.f32 %v511, %v594
    %v596 = vpop.f32.mrb[0].mxu0
    %v597 = vpop.f32.mrb[0].mxu0
    %v598 = vpop.f32.mrb[0].mxu0
    %599 = vdwg.mxu0
    %v600 = vmax.f32 %v595, 0.0
    %v601 = vadd.f32 %v600, %v380
    %v602 = vmax.f32 %v601, 0.0
    %v603 = vpack.c.bf16 %v602, %v602
    %v604 = vld [vmem:[#allocation13] sm:$0xf]
    %v605 = vld [vmem:[#allocation13 + $0x4] sm:$0xf]
    %v606 = vld [vmem:[#allocation13 + $0x8] sm:$0xf]
    %v607 = vld [vmem:[#allocation13 + $0xc] sm:$0xf]
    %v608 = vld [vmem:[#allocation13 + $0x10] sm:$0xf]
    %v609 = vld [vmem:[#allocation13 + $0x14] sm:$0xf]
    %v610 = vld [vmem:[#allocation13 + $0x18] sm:$0xf]
    %v611 = vld [vmem:[#allocation13 + $0x1c] sm:$0xf]
    %v612 = vld [vmem:[#allocation13 + $0x20] sm:$0xf]
    %v613 = vld [vmem:[#allocation13 + $0x24] sm:$0xf]
    %v614 = vld [vmem:[#allocation13 + $0x28] sm:$0xf]
    %v615 = vld [vmem:[#allocation13 + $0x2c] sm:$0xf]
    %v616 = vld [vmem:[#allocation13 + $0x30] sm:$0xf]
    %v617 = vld [vmem:[#allocation13 + $0x34] sm:$0xf]
    %v618 = vld [vmem:[#allocation13 + $0x38] sm:$0xf]
    %v619 = vld [vmem:[#allocation13 + $0x3c] sm:$0xf]
    %v620 = vlaneseq
    %v621 = vshrl.u32 %v620, 7
    %v622 = vsub.s32 5, %v621
    %v623 = vrot.slane %v119, %v622
    %v640 = vunpack.c.l.b16 %v604
    %v641 = vunpack.c.l.b16 %v605
    %v642 = vunpack.c.l.b16 %v606
    %v643 = vunpack.c.l.b16 %v607
    %v644 = vunpack.c.l.b16 %v608
    %v645 = vunpack.c.l.b16 %v609
    %v646 = vunpack.c.l.b16 %v610
    %v647 = vunpack.c.l.b16 %v611
    %v648 = vunpack.c.l.b16 %v612
    %v649 = vunpack.c.l.b16 %v613
    %v650 = vunpack.c.l.b16 %v614
    %v651 = vunpack.c.l.b16 %v615
    %v652 = vunpack.c.l.b16 %v616
    %v653 = vunpack.c.l.b16 %v617
    %v654 = vunpack.c.l.b16 %v618
    %v655 = vunpack.c.l.b16 %v619
    %v656 = vpack.c.b16 %v641, %v640
    %v657 = vpack.c.b16 %v643, %v642
    %v658 = vpack.c.b16 %v645, %v644
    %v659 = vpack.c.b16 %v647, %v646
    %v660 = vpack.c.b16 %v649, %v648
    %v661 = vpack.c.b16 %v651, %v650
    %v662 = vpack.c.b16 %v653, %v652
    %v663 = vpack.c.b16 %v655, %v654
    %672 = vmatprep.subr.bf16.mxu0 0
    %673 = vmatpush1.bf16.msra.mxu0 %v656
    %674 = vmatprep.subr.bf16.mxu0 0
    %675 = vmatpush1.bf16.msra.mxu0 %v657
    %676 = vmatprep.subr.bf16.mxu0 0
    %677 = vmatpush1.bf16.msra.mxu0 %v658
    %678 = vmatprep.subr.bf16.mxu0 0
    %679 = vmatpush1.bf16.msra.mxu0 %v659
    %680 = vmatprep.subr.bf16.mxu0 0
    %681 = vmatpush1.bf16.msra.mxu0 %v660
    %682 = vmatprep.subr.bf16.mxu0 0
    %683 = vmatpush1.bf16.msra.mxu0 %v661
    %684 = vmatprep.subr.bf16.mxu0 0
    %685 = vmatpush1.bf16.msra.mxu0 %v662
    %686 = vmatprep.subr.bf16.mxu0 0
    %687 = vmatpush1.bf16.msra.mxu0 %v663
    %688 = vmatprep.subr.bf16.mxu0 0
    %689 = vmatpush1.bf16.msra.mxu0 0
    %690 = vmatprep.subr.bf16.mxu0 0
    %691 = vmatpush1.bf16.msra.mxu0 0
    %692 = vmatprep.subr.bf16.mxu0 0
    %693 = vmatpush1.bf16.msra.mxu0 0
    %694 = vmatprep.subr.bf16.mxu0 0
    %695 = vmatpush1.bf16.msra.mxu0 0
    %696 = vmatprep.subr.bf16.mxu0 0
    %697 = vmatpush1.bf16.msra.mxu0 0
    %698 = vmatprep.subr.bf16.mxu0 0
    %699 = vmatpush1.bf16.msra.mxu0 0
    %700 = vmatprep.subr.bf16.mxu0 0
    %701 = vmatpush1.bf16.msra.mxu0 0
    %702 = vmatprep.subr.bf16.mxu0 0
    %703 = vmatpush1.bf16.msra.mxu0 0
    %704 = vmatprep.mubr.bf16.mxu0 0
    %705 = vmatmul.mubr.bf16.gmra.mrb[0].mxu0 %v603
    %v706 = vpop.f32.mrb[0].mxu0
    %v707 = vadd.f32 %v623, %v706
    %v708 = vpop.f32.mrb[0].mxu0
    %v709 = vpop.f32.mrb[0].mxu0
    %v710 = vpop.f32.mrb[0].mxu0
    %711 = vdwg.mxu0
    %712 = vst [vmem:[#allocation14] sm:$0xff] %v707
    // Predicated region
    $region58: #{tpu_custom_call.1} parent=1 // pred_check
      _
    $region59: #{tpu_custom_call.1} parent=1 // pred_check_branch
      %714 = sbr.rel (0) target = $region61
    $region60: #{tpu_custom_call.1} parent=1 // pred_region
      %s716 = ssub.s32 128, 128
      %717 = vsyncadd [#allocation4], %s716
      %s719 = sshll.u32 [#allocation14], 4
      %s720 = int_to_ptr.vmem [resolvable:$true] %s719
      %722 = dma.vmem_to_hbm [thread:$0]  %s720, 128, %s7, [#allocation4]
    $region61: #{tpu_custom_call.1} parent=1 // pred_fallthru
      _
    // Predicated region
    $region62: #{tpu_custom_call.1} parent=1 // pred_check
      _
    $region63: #{tpu_custom_call.1} parent=1 // pred_check_branch
      %724 = sbr.rel (0) target = $region65
    $region64: #{tpu_custom_call.1} parent=1 // pred_region
      %725 = dma.done [#allocation4], 128
    $region65: #{tpu_custom_call.1} parent=1 // pred_fallthru
      _
    %726 = vsyncpa [#allocation3], 1
    %727 = vsyncpa [#allocation6], 1
    %728 = vsyncpa [#allocation9], 1
    %729 = vsyncpa [#allocation12], 1
    %730 = vsyncpa [#allocation4], 1

</llo_original>
